<compile_context>
chip_gen: v5e
topology: v5e:2x2
jax: 0.10.0
libtpu: 0.0.40
codegen_flags: <defaults>
</compile_context>

<pallas_src>
import functools

import jax
import jax.numpy as jnp
from jax.experimental import pallas as pl
from jax.experimental.pallas import tpu as pltpu


def _head_kernel(x_ref, w_ref, shift_ref, o_ref, *, TH, W, KH,
                 apply_bn, apply_relu):
    """Fused Conv(KHxKW, stride 1, 'same') [+ BN affine] [+ ReLU] for one row tile.

    x_ref:     ((TH+KH-1)*W, KW*Cin) bf16  padded-row tile, KW taps folded into lanes
    w_ref:     (KH, KW*Cin, Cout)    bf16  conv taps with BN scale folded in
    shift_ref: (1, Cout)             f32   folded BN shift (zeros if no BN)
    o_ref:     (TH*W, Cout)          bf16
    """
    m = TH * W
    acc = None
    for kh in range(KH):
        # Height tap kh = aligned (multiple-of-W) sublane slice of the
        # VMEM-resident block; the KW width taps are already folded into K.
        xs = x_ref[kh * W: kh * W + m, :]                       # (TH*W, KW*Cin)
        part = jnp.dot(xs, w_ref[kh], preferred_element_type=jnp.float32)
        acc = part if acc is None else acc + part
    if apply_bn:
        acc = acc + shift_ref[...]
    if apply_relu:
        acc = jnp.maximum(acc, 0.0)
    o_ref[...] = acc.astype(o_ref.dtype)


def _vmem_capacity_bytes():
    try:
        return int(pltpu.get_tpu_info().vmem_capacity_bytes)
    except Exception:
        return 64 * 1024 * 1024  # conservative (v7x per-core) fallback


def _pick_row_tile(H, W, Cin, Cout, KH, KW):
    """Largest divisor-of-H row tile whose working set fits a slice of VMEM."""
    budget = _vmem_capacity_bytes() // 8  # leave room for double-buffering + scratch
    th_best = 1
    for th in range(1, H + 1):
        if H % th:
            continue
        x_b = (th + KH - 1) * W * KW * Cin * 2   # bf16 input block
        o_b = th * W * Cout * 2                  # bf16 output block
        acc_b = th * W * Cout * 4                # fp32 accumulator
        if 2 * (x_b + o_b) + acc_b <= budget:
            th_best = th
    return th_best


def _pick_vmem_limit(*, x_block_bytes, o_block_bytes, const_bytes):
    cap = _vmem_capacity_bytes()
    # double-buffered x/out blocks + resident constants + fp32 accumulator + slack
    need = 2 * (x_block_bytes + o_block_bytes) + const_bytes \
        + 2 * o_block_bytes + (2 << 20)
    return int(min(max(need, 16 << 20), cap - (8 << 20)))


def head_model_forward(x_nchw, params, layernum, *, row_tile=None):
    """HeadModel.forward: first `layernum` stem layers (conv / +bn / +relu).

    Returns NCHW bf16 for layernum >= 1 (fp32 MXU accumulation in-kernel); the
    identity branch (layernum == 0) returns the input unchanged.
    """
    if layernum == 0:
        return x_nchw  # HeadModel returns input unchanged

    w = params["conv_w"]                         # (Cout, Cin, KH, KW), OIHW
    Cout, Cin, KH, KW = w.shape
    N, C, H, W = x_nchw.shape
    assert C == Cin
    assert KH % 2 == 1 and KW % 2 == 1, "synthetic stem uses odd 'same' kernels"
    pad_h, pad_w = KH // 2, KW // 2              # stride-1 'same' conv

    TH = row_tile if row_tile is not None else _pick_row_tile(H, W, Cin, Cout, KH, KW)
    assert H % TH == 0, "TODO(synk): ragged last row tile not implemented"
    T = H // TH
    halo = KH - 1

    # ---- BN folded to scale/shift; scale folded into the conv taps ----------
    eps = 1e-5
    if layernum >= 2:
        scale = params["bn_gamma"] * jax.lax.rsqrt(params["bn_var"] + eps)
        shift = params["bn_beta"] - params["bn_mean"] * scale
    else:
        scale = jnp.ones((Cout,), jnp.float32)
        shift = jnp.zeros((Cout,), jnp.float32)

    # (KH, KW*Cin, Cout) taps: KW folded into the contraction dim, bf16.
    w_taps = jnp.transpose(w.astype(jnp.float32), (2, 3, 1, 0))      # (KH,KW,Cin,Cout)
    w_taps = (w_taps * scale[None, None, None, :]
              ).reshape(KH, KW * Cin, Cout).astype(jnp.bfloat16)
    shift_row = shift.astype(jnp.float32).reshape(1, Cout)

    # ---- staging: bf16 first, width taps -> lanes, row tiles with halo -------
    x = jnp.transpose(x_nchw, (0, 2, 3, 1)).astype(jnp.bfloat16)      # NHWC bf16
    x_pad = jnp.pad(x, ((0, 0), (pad_h, pad_h), (pad_w, pad_w), (0, 0)))
    # x_w[n, hp, j, kw*Cin + c] = x_pad[n, hp, j+kw, c]  -> lane dim KW*Cin (dense-ish)
    x_w = jnp.concatenate([x_pad[:, :, kw:kw + W, :] for kw in range(KW)], axis=-1)
    # Row tiles with KH-1 duplicated halo rows so plain Blocked specs pipeline them.
    x_tiles = jnp.stack([x_w[:, t * TH: t * TH + TH + halo] for t in range(T)], axis=1)
    x_tiles = x_tiles.reshape(N, T, (TH + halo) * W, KW * Cin)

    kernel = functools.partial(_head_kernel, TH=TH, W=W, KH=KH,
                               apply_bn=(layernum >= 2),
                               apply_relu=(layernum >= 3))

    vmem_limit = _pick_vmem_limit(
        x_block_bytes=(TH + halo) * W * KW * Cin * 2,
        o_block_bytes=TH * W * Cout * 2,
        const_bytes=KH * KW * Cin * Cout * 2 + Cout * 4)

    out = pl.pallas_call(
        kernel,
        out_shape=jax.ShapeDtypeStruct((N, T, TH * W, Cout), jnp.bfloat16),
        grid=(N, T),
        in_specs=[
            pl.BlockSpec((pl.Squeezed(), pl.Squeezed(), (TH + halo) * W, KW * Cin),
                         lambda n, t: (n, t, 0, 0)),
            # Constant index maps -> weights/shift stay VMEM-resident across steps.
            pl.BlockSpec((KH, KW * Cin, Cout), lambda n, t: (0, 0, 0)),
            pl.BlockSpec((1, Cout), lambda n, t: (0, 0)),
        ],
        out_specs=pl.BlockSpec((pl.Squeezed(), pl.Squeezed(), TH * W, Cout),
                               lambda n, t: (n, t, 0, 0)),
        compiler_params=pltpu.CompilerParams(
            dimension_semantics=("parallel", "parallel"),
            vmem_limit_bytes=vmem_limit),
    )(x_tiles, w_taps, shift_row)

    # ---- epilogue: bf16 reshape (free) + one transpose to NCHW ---------------
    # A channels-last consumer could take `out.reshape(N, H, W, Cout)` directly.
    out = out.reshape(N, H, W, Cout)
    return jnp.transpose(out, (0, 3, 1, 2))


def head_model_reference(x_nchw, params, layernum, *, match_kernel_precision=False):
    """Pure-JAX reference mirroring the PyTorch semantics.

    match_kernel_precision=True applies the same bf16 operand/output rounding
    the kernel uses (fp32 accumulation in both) for a tight numerical check.
    """
    if layernum == 0:
        return x_nchw
    w = params["conv_w"].astype(jnp.float32)
    Cout = w.shape[0]
    eps = 1e-5
    if layernum >= 2:
        scale = params["bn_gamma"] * jax.lax.rsqrt(params["bn_var"] + eps)
        shift = params["bn_beta"] - params["bn_mean"] * scale
    else:
        scale = jnp.ones((Cout,), jnp.float32)
        shift = jnp.zeros((Cout,), jnp.float32)
    x = x_nchw.astype(jnp.float32)
    w_folded = w * scale[:, None, None, None]
    if match_kernel_precision:
        x = x.astype(jnp.bfloat16).astype(jnp.float32)
        w_folded = w_folded.astype(jnp.bfloat16).astype(jnp.float32)
    y = jax.lax.conv_general_dilated(
        x, w_folded, window_strides=(1, 1), padding="SAME",
        dimension_numbers=("NCHW", "OIHW", "NCHW"),
        precision=jax.lax.Precision.HIGHEST)
    y = y + shift[None, :, None, None]
    if layernum >= 3:
        y = jnp.maximum(y, 0.0)
    if match_kernel_precision:
        y = y.astype(jnp.bfloat16).astype(jnp.float32)
    return y


if __name__ == "__main__":
    key = jax.random.PRNGKey(0)
    k1, k2, k3, k4, k5, k6 = jax.random.split(key, 6)

    # Small shapes consistent with an image-classifier stem.
    N, Cin, H, W = 2, 4, 16, 16
    Cout, KH, KW = 32, 3, 3
    layernum = 3  # name='resnet18' -> first 3 children: conv1, bn1, relu

    x = jax.random.normal(k1, (N, Cin, H, W), jnp.float32)
    params = {
        "conv_w":   0.1 * jax.random.normal(k2, (Cout, Cin, KH, KW), jnp.float32),
        "bn_gamma": 1.0 + 0.1 * jax.random.normal(k3, (Cout,), jnp.float32),
        "bn_beta":  0.1 * jax.random.normal(k4, (Cout,), jnp.float32),
        "bn_mean":  0.1 * jax.random.normal(k5, (Cout,), jnp.float32),
        "bn_var":   jnp.abs(jax.random.normal(k6, (Cout,), jnp.float32)) + 0.5,
    }

    out = jax.block_until_ready(head_model_forward(x, params, layernum))
    assert out.shape == (N, Cout, H, W), out.shape
    out_f32 = out.astype(jnp.float32)

    # Exact-math check vs. a reference with the same bf16 operand/output rounding.
    ref_bf16 = head_model_reference(x, params, layernum, match_kernel_precision=True)
    assert jnp.allclose(out_f32, ref_bf16, atol=2e-2, rtol=2e-2), \
        "mismatch vs bf16-matched reference"

    # Fidelity check vs. the pure-fp32 PyTorch-equivalent reference.
    ref_f32 = head_model_reference(x, params, layernum)
    assert jnp.allclose(out_f32, ref_f32, atol=6e-2, rtol=6e-2), \
        "mismatch vs fp32 reference"

    # Row-tiled path (exercises the KH-1 halo handling, grid=(N, H//TH)).
    out_tiled = jax.block_until_ready(head_model_forward(x, params, layernum, row_tile=8))
    assert jnp.allclose(out_tiled.astype(jnp.float32), ref_bf16, atol=2e-2, rtol=2e-2), \
        "mismatch on row-tiled path"

    # Exercise the other layernum branches: conv-only, conv+bn, identity.
    for ln in (1, 2):
        o = jax.block_until_ready(head_model_forward(x, params, ln))
        r = head_model_reference(x, params, ln, match_kernel_precision=True)
        assert jnp.allclose(o.astype(jnp.float32), r, atol=2e-2, rtol=2e-2), \
            f"mismatch at layernum={ln}"
    assert jnp.array_equal(head_model_forward(x, params, 0), x)

    print("KERNEL_OK")
</pallas_src>

<mosaic_0001>
module attributes {stable_mosaic.version = 11 : i64} {
  func.func @_head_kernel(%arg0: i32, %arg1: i32, %arg2: memref<1x1x288x12xbf16, #tpu.memory_space<vmem>>, %arg3: memref<3x12x32xbf16, #tpu.memory_space<vmem>>, %arg4: memref<1x32xf32, #tpu.memory_space<vmem>>, %arg5: memref<1x1x256x32xbf16, #tpu.memory_space<vmem>>) attributes {dimension_semantics = [#tpu.dimension_semantics<parallel>, #tpu.dimension_semantics<parallel>], iteration_bounds = array<i64: 2, 1>, scalar_prefetch = 0 : i64, scratch_operands = 0 : i64, tpu.core_type = #tpu.core_type<tc>, window_params = [{transform_indices = @transform_0, window_bounds = array<i64: 1, 1, 288, 12>}, {pipeline_mode = #tpu.pipeline_mode<synchronous>, transform_indices = @transform_1, window_bounds = array<i64: 3, 12, 32>}, {pipeline_mode = #tpu.pipeline_mode<synchronous>, transform_indices = @transform_2, window_bounds = array<i64: 1, 32>}, {transform_indices = @transform_3, window_bounds = array<i64: 1, 1, 256, 32>}]} {
    %c0 = arith.constant 0 : index
    %c0_0 = arith.constant 0 : index
    %c0_1 = arith.constant 0 : index
    %c0_2 = arith.constant 0 : index
    %0 = vector.load %arg2[%c0, %c0_0, %c0_1, %c0_2] : memref<1x1x288x12xbf16, #tpu.memory_space<vmem>>, vector<1x1x256x12xbf16>
    %1 = vector.shape_cast %0 : vector<1x1x256x12xbf16> to vector<256x12xbf16>
    %c0_3 = arith.constant 0 : index
    %c0_4 = arith.constant 0 : index
    %c0_5 = arith.constant 0 : index
    %2 = vector.load %arg3[%c0_3, %c0_4, %c0_5] : memref<3x12x32xbf16, #tpu.memory_space<vmem>>, vector<1x12x32xbf16>
    %3 = vector.shape_cast %2 : vector<1x12x32xbf16> to vector<12x32xbf16>
    %cst = arith.constant dense<0.000000e+00> : vector<256x32xf32>
    %4 = tpu.matmul %1, %3, %cst {dimension_numbers = #tpu.dot_dimension_numbers<[1], [0], [0], [1], [0, 0, 1, 1], [], []>} : vector<256x12xbf16>, vector<12x32xbf16>, vector<256x32xf32> -> vector<256x32xf32>
    %c0_6 = arith.constant 0 : index
    %c0_7 = arith.constant 0 : index
    %c16 = arith.constant 16 : index
    %c0_8 = arith.constant 0 : index
    %5 = vector.load %arg2[%c0_6, %c0_7, %c16, %c0_8] : memref<1x1x288x12xbf16, #tpu.memory_space<vmem>>, vector<1x1x256x12xbf16>
    %6 = vector.shape_cast %5 : vector<1x1x256x12xbf16> to vector<256x12xbf16>
    %c1 = arith.constant 1 : index
    %c0_9 = arith.constant 0 : index
    %c0_10 = arith.constant 0 : index
    %7 = vector.load %arg3[%c1, %c0_9, %c0_10] : memref<3x12x32xbf16, #tpu.memory_space<vmem>>, vector<1x12x32xbf16>
    %8 = vector.shape_cast %7 : vector<1x12x32xbf16> to vector<12x32xbf16>
    %cst_11 = arith.constant dense<0.000000e+00> : vector<256x32xf32>
    %9 = tpu.matmul %6, %8, %cst_11 {dimension_numbers = #tpu.dot_dimension_numbers<[1], [0], [0], [1], [0, 0, 1, 1], [], []>} : vector<256x12xbf16>, vector<12x32xbf16>, vector<256x32xf32> -> vector<256x32xf32>
    %10 = arith.addf %4, %9 : vector<256x32xf32>
    %c0_12 = arith.constant 0 : index
    %c0_13 = arith.constant 0 : index
    %c32 = arith.constant 32 : index
    %c0_14 = arith.constant 0 : index
    %11 = vector.load %arg2[%c0_12, %c0_13, %c32, %c0_14] : memref<1x1x288x12xbf16, #tpu.memory_space<vmem>>, vector<1x1x256x12xbf16>
    %12 = vector.shape_cast %11 : vector<1x1x256x12xbf16> to vector<256x12xbf16>
    %c2 = arith.constant 2 : index
    %c0_15 = arith.constant 0 : index
    %c0_16 = arith.constant 0 : index
    %13 = vector.load %arg3[%c2, %c0_15, %c0_16] : memref<3x12x32xbf16, #tpu.memory_space<vmem>>, vector<1x12x32xbf16>
    %14 = vector.shape_cast %13 : vector<1x12x32xbf16> to vector<12x32xbf16>
    %cst_17 = arith.constant dense<0.000000e+00> : vector<256x32xf32>
    %15 = tpu.matmul %12, %14, %cst_17 {dimension_numbers = #tpu.dot_dimension_numbers<[1], [0], [0], [1], [0, 0, 1, 1], [], []>} : vector<256x12xbf16>, vector<12x32xbf16>, vector<256x32xf32> -> vector<256x32xf32>
    %16 = arith.addf %10, %15 : vector<256x32xf32>
    %c0_18 = arith.constant 0 : index
    %c0_19 = arith.constant 0 : index
    %17 = vector.load %arg4[%c0_18, %c0_19] : memref<1x32xf32, #tpu.memory_space<vmem>>, vector<1x32xf32>
    %18 = vector.broadcast %17 : vector<1x32xf32> to vector<256x32xf32>
    %19 = arith.addf %16, %18 : vector<256x32xf32>
    %cst_20 = arith.constant 0.000000e+00 : f32
    %20 = vector.broadcast %cst_20 : f32 to vector<256x32xf32>
    %21 = arith.maximumf %19, %20 : vector<256x32xf32>
    %22 = arith.truncf %21 : vector<256x32xf32> to vector<256x32xbf16>
    %c0_21 = arith.constant 0 : index
    %c0_22 = arith.constant 0 : index
    %c0_23 = arith.constant 0 : index
    %c0_24 = arith.constant 0 : index
    %23 = vector.load %arg5[%c0_21, %c0_22, %c0_23, %c0_24] : memref<1x1x256x32xbf16, #tpu.memory_space<vmem>>, vector<1x1x256x32xbf16>
    %24 = vector.shape_cast %23 : vector<1x1x256x32xbf16> to vector<256x32xbf16>
    %25 = vector.shape_cast %22 : vector<256x32xbf16> to vector<1x1x256x32xbf16>
    tpu.vector_store %arg5[%c0_21, %c0_22, %c0_23, %c0_24], %25 {strides = array<i32>} : memref<1x1x256x32xbf16, #tpu.memory_space<vmem>>, vector<1x1x256x32xbf16>,
    return
  }
  func.func @transform_0(%arg0: i32, %arg1: i32) -> (i32, i32, i32, i32) {
    %c0_i32 = arith.constant 0 : i32
    %c0_i32_0 = arith.constant 0 : i32
    %c0_i32_1 = arith.constant 0 : i32
    return %arg0, %arg1, %c0_i32, %c0_i32_0 : i32, i32, i32, i32
  }
  func.func @transform_1(%arg0: i32, %arg1: i32) -> (i32, i32, i32) {
    %c0_i32 = arith.constant 0 : i32
    %c0_i32_0 = arith.constant 0 : i32
    %c0_i32_1 = arith.constant 0 : i32
    %c0_i32_2 = arith.constant 0 : i32
    return %c0_i32, %c0_i32_0, %c0_i32_1 : i32, i32, i32
  }
  func.func @transform_2(%arg0: i32, %arg1: i32) -> (i32, i32) {
    %c0_i32 = arith.constant 0 : i32
    %c0_i32_0 = arith.constant 0 : i32
    %c0_i32_1 = arith.constant 0 : i32
    return %c0_i32, %c0_i32_0 : i32, i32
  }
  func.func @transform_3(%arg0: i32, %arg1: i32) -> (i32, i32, i32, i32) {
    %c0_i32 = arith.constant 0 : i32
    %c0_i32_0 = arith.constant 0 : i32
    %c0_i32_1 = arith.constant 0 : i32
    return %arg0, %arg1, %c0_i32, %c0_i32_0 : i32, i32, i32, i32
  }
}

</mosaic_0001>

<llo_original>
// kernel: tpu_custom_call.1
$region0: #{tpu_custom_call.1}
  #allocation0 [shape = 'u32[]', space=smem, size = 0x4, offset = 0x4, fixed_abs, tag = 'smem constant byte address 0x4 - core index']
  #allocation1 [shape = 'u32[72,128]{1,0:T(1,128)}', space=vmem, size = 0x9000, scoped, tag = 'internal scratch']
  %s0 = inlined_call_operand.vmem [shape: bf16[2,1,288,12], index: 0, kind: input, shape index: {}]
  %s1 = inlined_call_operand.vmem [shape: bf16[3,12,32], index: 1, kind: input, shape index: {}]
  %s2 = inlined_call_operand.vmem [shape: f32[1,32], index: 2, kind: input, shape index: {}]
  %s3 = inlined_call_operand.vmem [shape: bf16[2,1,256,32], index: 3, kind: output, shape index: {}]
  %s4 = sld [smem:[#allocation0]]
  $region45: #{tpu_custom_call.1} parent=0
    _
  %s6 = ssub.s32 1, %s4
  %s7 = scalar_select 0, %s6, %s4
  loop: start=0, step=1, limit=4
  $region2: #{tpu_custom_call.1} parent=0 // loop_pre_header
    _
  $region3: #{tpu_custom_call.1} parent=0 // loop_header
    %s9 = sphi 0, %s13
    %p10 = scmp.ge.s32.totalorder %s9, 4
    %s16 = sphi 0, %s28
    %s17 = sphi 0, %s24
    %s18 = sphi 0, %s16
    %s19 = sphi 0, %s17
    %s20 = sphi 0, %s18
    %s21 = sphi 0, %s19
    %s33 = sphi 0, %s35
    %s36 = sphi 0, %s33
    %s37 = sphi 0, %s36
    %s53 = sphi 0, %s37
    %s57 = sphi 0, %s57
    %s59 = sphi 0, %s57
    %s60 = sphi 0, %s59
    %s74 = sphi 0, %s60
    %s78 = sphi 0, %s78
    %s80 = sphi 0, %s78
    %s81 = sphi 0, %s80
    %s95 = sphi 0, %s81
    %s103 = sphi 0, %s105
    %s106 = sphi 0, %s103
    %s107 = sphi 0, %s106
    %s123 = sphi 0, %s107
  $region4: #{tpu_custom_call.1} parent=0 // loop_header_branch
    %12 = sbr.rel (%p10) target = $region8
  $region5: #{tpu_custom_call.1} parent=0 // loop_body
    %s14 = ssub.s32 %s9, 1
    %s15 = ssub.s32 %s9, 2
    %s22 = sadd.s32 1, %s17
    %p23 = scmp.ge.s32.totalorder %s22, 1
    %s24 = scalar_select %p23, 0, %s22
    %s25 = sadd.s32 1, %s16
    %s26 = scalar_select %p23, %s25, %s16
    %p27 = scmp.ge.s32.totalorder %s26, 2
    %s28 = scalar_select %p27, 0, %s26
    %s29 = ssub.s32 %s16, %s28
    %s30 = ssub.s32 %s17, %s24
    %s31 = sor.u32 %s29, %s30
    %p32 = scmp.eq.s32.totalorder %s31, 0
    %s34 = sadd.s32 %s33, 1
    %s35 = scalar_select %p32, %s33, %s34
    %p38 = pneg %p32
    %p39 = scmp.eq.s32.totalorder %s9, 1
    %p40 = por %p38, %p39
    %p41 = scmp.ne.s32.totalorder %s33, %s36
    %p42 = scmp.eq.s32.totalorder %s9, 0
    %p43 = por %p41, %p42
    %p44 = scmp.ne.s32.totalorder %s33, %s36
    %p45 = scmp.eq.s32.totalorder %s14, 1
    %p46 = por %p44, %p45
    %p47 = scmp.ne.s32.totalorder %s36, %s37
    %p48 = scmp.eq.s32.totalorder %s14, 0
    %p49 = por %p47, %p48
    %p50 = scmp.ne.s32.totalorder %s36, %s37
    %p51 = scmp.eq.s32.totalorder %s15, 1
    %p52 = por %p50, %p51
    %p54 = scmp.ne.s32.totalorder %s37, %s53
    %p55 = scmp.eq.s32.totalorder %s15, 0
    %p56 = por %p54, %p55
    %s58 = sadd.s32 %s57, 1
    %p61 = scmp.eq.s32.totalorder %s9, 1
    %p62 = scmp.ne.s32.totalorder %s57, %s59
    %p63 = scmp.eq.s32.totalorder %s9, 0
    %p64 = por %p62, %p63
    %p65 = scmp.ne.s32.totalorder %s57, %s59
    %p66 = scmp.eq.s32.totalorder %s14, 1
    %p67 = por %p65, %p66
    %p68 = scmp.ne.s32.totalorder %s59, %s60
    %p69 = scmp.eq.s32.totalorder %s14, 0
    %p70 = por %p68, %p69
    %p71 = scmp.ne.s32.totalorder %s59, %s60
    %p72 = scmp.eq.s32.totalorder %s15, 1
    %p73 = por %p71, %p72
    %p75 = scmp.ne.s32.totalorder %s60, %s74
    %p76 = scmp.eq.s32.totalorder %s15, 0
    %p77 = por %p75, %p76
    %s79 = sadd.s32 %s78, 1
    %p82 = scmp.eq.s32.totalorder %s9, 1
    %p83 = scmp.ne.s32.totalorder %s78, %s80
    %p84 = scmp.eq.s32.totalorder %s9, 0
    %p85 = por %p83, %p84
    %p86 = scmp.ne.s32.totalorder %s78, %s80
    %p87 = scmp.eq.s32.totalorder %s14, 1
    %p88 = por %p86, %p87
    %p89 = scmp.ne.s32.totalorder %s80, %s81
    %p90 = scmp.eq.s32.totalorder %s14, 0
    %p91 = por %p89, %p90
    %p92 = scmp.ne.s32.totalorder %s80, %s81
    %p93 = scmp.eq.s32.totalorder %s15, 1
    %p94 = por %p92, %p93
    %p96 = scmp.ne.s32.totalorder %s81, %s95
    %p97 = scmp.eq.s32.totalorder %s15, 0
    %p98 = por %p96, %p97
    %s99 = ssub.s32 %s16, %s28
    %s100 = ssub.s32 %s17, %s24
    %s101 = sor.u32 %s99, %s100
    %p102 = scmp.eq.s32.totalorder %s101, 0
    %s104 = sadd.s32 %s103, 1
    %s105 = scalar_select %p102, %s103, %s104
    %p108 = pneg %p102
    %p109 = scmp.eq.s32.totalorder %s9, 1
    %p110 = por %p108, %p109
    %p111 = scmp.ne.s32.totalorder %s103, %s106
    %p112 = scmp.eq.s32.totalorder %s9, 0
    %p113 = por %p111, %p112
    %p114 = scmp.ne.s32.totalorder %s103, %s106
    %p115 = scmp.eq.s32.totalorder %s14, 1
    %p116 = por %p114, %p115
    %p117 = scmp.ne.s32.totalorder %s106, %s107
    %p118 = scmp.eq.s32.totalorder %s14, 0
    %p119 = por %p117, %p118
    %p120 = scmp.ne.s32.totalorder %s106, %s107
    %p121 = scmp.eq.s32.totalorder %s15, 1
    %p122 = por %p120, %p121
    %p124 = scmp.ne.s32.totalorder %s107, %s123
    %p125 = scmp.eq.s32.totalorder %s15, 0
    %p126 = por %p124, %p125
    %p127 = scmp.le.s32.totalorder 1, %s9
    %p128 = scmp.lt.s32.totalorder %s9, 3
    %p129 = pnand %p127, %p128
    %p130 = pneg %p129
    // Predicated region
    $region9: #{tpu_custom_call.1} parent=5 // pred_check
      _
    $region10: #{tpu_custom_call.1} parent=5 // pred_check_branch
      %132 = sbr.rel (%p129) target = $region12
    $region11: #{tpu_custom_call.1} parent=5 // pred_region
      %s133 = ssub.s32 %s9, 1
      // Predicated region
      $region13: #{tpu_custom_call.1} parent=11 // pred_check
        %p134 = pneg %p70
      $region14: #{tpu_custom_call.1} parent=11 // pred_check_branch
        %136 = sbr.rel (%p134) target = $region16
      $region15: #{tpu_custom_call.1} parent=11 // pred_region
        _
      $region16: #{tpu_custom_call.1} parent=11 // pred_fallthru
        _
      // Predicated region
      $region17: #{tpu_custom_call.1} parent=11 // pred_check
        %p137 = pneg %p91
      $region18: #{tpu_custom_call.1} parent=11 // pred_check_branch
        %139 = sbr.rel (%p137) target = $region20
      $region19: #{tpu_custom_call.1} parent=11 // pred_region
        _
      $region20: #{tpu_custom_call.1} parent=11 // pred_fallthru
        _
    $region12: #{tpu_custom_call.1} parent=5 // pred_fallthru
      _
    %p140 = scmp.lt.s32.totalorder %s9, 2
    // Predicated region
    $region21: #{tpu_custom_call.1} parent=5 // pred_check
      %p141 = pneg %p140
    $region22: #{tpu_custom_call.1} parent=5 // pred_check_branch
      %143 = sbr.rel (%p141) target = $region24
    $region23: #{tpu_custom_call.1} parent=5 // pred_region
      // Predicated region
      $region25: #{tpu_custom_call.1} parent=23 // pred_check
        %p144 = pneg %p43
      $region26: #{tpu_custom_call.1} parent=23 // pred_check_branch
        %146 = sbr.rel (%p144) target = $region28
      $region27: #{tpu_custom_call.1} parent=23 // pred_region
        %p147 = scmp.lt.s32.totalorder %s16, 1
        %s148 = scalar_select %p147, %s16, 1
        %p149 = scmp.lt.s32.totalorder %s17, 0
        %s150 = scalar_select %p149, %s17, 0
        %s151 = smul.addr %s150, 36
        %s152 = smul.addr %s148, 36
        %s153 = sadd.s32 %s151, %s152
        %s154 = smul.addr %s153, 4
        %s155 = scalar_lea.vmem %s0, %s154
      $region28: #{tpu_custom_call.1} parent=23 // pred_fallthru
        _
    $region24: #{tpu_custom_call.1} parent=5 // pred_fallthru
      _
    %p156 = scmp.le.s32.totalorder 1, %s9
    %p157 = scmp.lt.s32.totalorder %s9, 3
    %p158 = pnand %p156, %p157
    %p159 = pneg %p158
    // Predicated region
    $region29: #{tpu_custom_call.1} parent=5 // pred_check
      _
    $region30: #{tpu_custom_call.1} parent=5 // pred_check_branch
      %161 = sbr.rel (%p158) target = $region32
    $region31: #{tpu_custom_call.1} parent=5 // pred_region
      %s162 = ssub.s32 %s9, 1
      %p163 = scmp.lt.s32.totalorder %s18, 1
      %s164 = scalar_select %p163, %s18, 1
      %p165 = scmp.lt.s32.totalorder %s19, 0
      %s166 = scalar_select %p165, %s19, 0
      %s167 = smul.addr %s166, 36
      %s168 = smul.addr %s164, 36
      %s169 = sadd.s32 %s167, %s168
      %s170 = smul.addr %s169, 4
      %s171 = scalar_lea.vmem %s0, %s170
      %p172 = pneg %p49
      %p173 = pneg %p46
      %p174 = pneg %p70
      %p175 = pneg %p67
      %p176 = pneg %p91
      %p177 = pneg %p88
      %p178 = pneg %p119
      %p179 = pneg %p116
      %p180 = scmp.lt.s32.totalorder %s18, 1
      %s181 = scalar_select %p180, %s18, 1
      %p182 = scmp.lt.s32.totalorder %s19, 0
      %s183 = scalar_select %p182, %s19, 0
      %s184 = smul.addr %s183, 32
      %s185 = smul.addr %s181, 32
      %s186 = sadd.s32 %s184, %s185
      %s187 = smul.addr %s186, 4
      %s188 = scalar_lea.vmem %s3, %s187
      %p189 = scmp.lt.s32.totalorder %s18, 1
      %s190 = scalar_select %p189, %s18, 1
      %p191 = scmp.lt.s32.totalorder %s19, 0
      %s192 = scalar_select %p191, %s19, 0
      %s193 = smul.addr %s192, 36
      %s194 = smul.addr %s190, 36
      %s195 = sadd.s32 %s193, %s194
      %s196 = smul.addr %s195, 4
      %s197 = scalar_lea.vmem %s0, %s196
      %p198 = scmp.lt.s32.totalorder %s18, 1
      %s199 = scalar_select %p198, %s18, 1
      %p200 = scmp.lt.s32.totalorder %s19, 0
      %s201 = scalar_select %p200, %s19, 0
      %s202 = smul.addr %s201, 32
      %s203 = smul.addr %s199, 32
      %s204 = sadd.s32 %s202, %s203
      %s205 = smul.addr %s204, 4
      %s206 = scalar_lea.vmem %s3, %s205
      %v208 = vld [vmem:[%s197] sm:$0xf]
      %v209 = vld [vmem:[%s197 + $0x4] sm:$0xf]
      %v210 = vld [vmem:[%s197 + $0x8] sm:$0xf]
      %v211 = vld [vmem:[%s197 + $0xc] sm:$0xf]
      %v212 = vld [vmem:[%s197 + $0x10] sm:$0xf]
      %v213 = vld [vmem:[%s197 + $0x14] sm:$0xf]
      %v214 = vld [vmem:[%s197 + $0x18] sm:$0xf]
      %v215 = vld [vmem:[%s197 + $0x1c] sm:$0xf]
      %v216 = vld [vmem:[%s197 + $0x20] sm:$0xf]
      %v217 = vld [vmem:[%s197 + $0x24] sm:$0xf]
      %v218 = vld [vmem:[%s197 + $0x28] sm:$0xf]
      %v219 = vld [vmem:[%s197 + $0x2c] sm:$0xf]
      %v220 = vld [vmem:[%s197 + $0x30] sm:$0xf]
      %v221 = vld [vmem:[%s197 + $0x34] sm:$0xf]
      %v222 = vld [vmem:[%s197 + $0x38] sm:$0xf]
      %v223 = vld [vmem:[%s197 + $0x3c] sm:$0xf]
      %v224 = vld [vmem:[%s197 + $0x40] sm:$0xf]
      %v225 = vld [vmem:[%s197 + $0x44] sm:$0xf]
      %v226 = vld [vmem:[%s197 + $0x48] sm:$0xf]
      %v227 = vld [vmem:[%s197 + $0x4c] sm:$0xf]
      %v228 = vld [vmem:[%s197 + $0x50] sm:$0xf]
      %v229 = vld [vmem:[%s197 + $0x54] sm:$0xf]
      %v230 = vld [vmem:[%s197 + $0x58] sm:$0xf]
      %v231 = vld [vmem:[%s197 + $0x5c] sm:$0xf]
      %v232 = vld [vmem:[%s197 + $0x60] sm:$0xf]
      %v233 = vld [vmem:[%s197 + $0x64] sm:$0xf]
      %v234 = vld [vmem:[%s197 + $0x68] sm:$0xf]
      %v235 = vld [vmem:[%s197 + $0x6c] sm:$0xf]
      %v236 = vld [vmem:[%s197 + $0x70] sm:$0xf]
      %v237 = vld [vmem:[%s197 + $0x74] sm:$0xf]
      %v238 = vld [vmem:[%s197 + $0x78] sm:$0xf]
      %v239 = vld [vmem:[%s197 + $0x7c] sm:$0xf]
      %v240 = vld [vmem:[%s1] sm:$0xf]
      %v241 = vld [vmem:[%s1 + $0x4] sm:$0x3]
      %v242 = vld [vmem:[%s197 + $0x80] sm:$0xf]
      %v243 = vld [vmem:[%s197 + $0x84] sm:$0xf]
      %s244 = scalar_lea.vmem %s1, 8
      %v245 = vld [vmem:[%s244] sm:$0xf]
      %v246 = vld [vmem:[%s244 + $0x4] sm:$0x3]
      %v279 = vunpack.c.l.b16 %v210
      %v280 = vunpack.c.l.b16 %v211
      %v281 = vunpack.c.l.b16 %v212
      %v282 = vunpack.c.l.b16 %v213
      %v283 = vunpack.c.l.b16 %v214
      %v284 = vunpack.c.l.b16 %v215
      %v285 = vunpack.c.l.b16 %v216
      %v286 = vunpack.c.l.b16 %v217
      %v287 = vunpack.c.l.b16 %v218
      %v288 = vunpack.c.l.b16 %v219
      %v289 = vunpack.c.l.b16 %v220
      %v290 = vunpack.c.l.b16 %v221
      %v291 = vunpack.c.l.b16 %v222
      %v292 = vunpack.c.l.b16 %v223
      %v293 = vunpack.c.l.b16 %v224
      %v294 = vunpack.c.l.b16 %v225
      %v295 = vunpack.c.l.b16 %v226
      %v296 = vunpack.c.l.b16 %v227
      %v297 = vunpack.c.l.b16 %v228
      %v298 = vunpack.c.l.b16 %v229
      %v299 = vunpack.c.l.b16 %v230
      %v300 = vunpack.c.l.b16 %v231
      %v301 = vunpack.c.l.b16 %v232
      %v302 = vunpack.c.l.b16 %v233
      %v303 = vunpack.c.l.b16 %v234
      %v304 = vunpack.c.l.b16 %v235
      %v305 = vunpack.c.l.b16 %v236
      %v306 = vunpack.c.l.b16 %v237
      %v307 = vunpack.c.l.b16 %v238
      %v308 = vunpack.c.l.b16 %v239
      %v309 = vunpack.c.l.b16 %v242
      %v310 = vunpack.c.l.b16 %v243
      %v311 = vpack.c.b16 %v280, %v279
      %v312 = vpack.c.b16 %v282, %v281
      %v313 = vpack.c.b16 %v284, %v283
      %v314 = vpack.c.b16 %v286, %v285
      %v315 = vpack.c.b16 %v288, %v287
      %v316 = vpack.c.b16 %v290, %v289
      %v317 = vpack.c.b16 %v292, %v291
      %v318 = vpack.c.b16 %v294, %v293
      %v319 = vpack.c.b16 %v296, %v295
      %v320 = vpack.c.b16 %v298, %v297
      %v321 = vpack.c.b16 %v300, %v299
      %v322 = vpack.c.b16 %v302, %v301
      %v323 = vpack.c.b16 %v304, %v303
      %v324 = vpack.c.b16 %v306, %v305
      %v325 = vpack.c.b16 %v308, %v307
      %v326 = vpack.c.b16 %v310, %v309
      %v329 = vunpack.c.l.b16 %v245
      %v330 = vunpack.c.l.b16 %v246
      %v331 = vpack.c.b16 %v330, %v329
      %vm332 = vcmask 97280
      %v334 = vsel %vm332, %v311, 0
      %v337 = vsel %vm332, %v312, 0
      %v340 = vsel %vm332, %v313, 0
      %v343 = vsel %vm332, %v314, 0
      %v346 = vsel %vm332, %v315, 0
      %v349 = vsel %vm332, %v316, 0
      %v352 = vsel %vm332, %v317, 0
      %v355 = vsel %vm332, %v318, 0
      %v358 = vsel %vm332, %v319, 0
      %v361 = vsel %vm332, %v320, 0
      %v364 = vsel %vm332, %v321, 0
      %v367 = vsel %vm332, %v322, 0
      %v370 = vsel %vm332, %v323, 0
      %v373 = vsel %vm332, %v324, 0
      %v376 = vsel %vm332, %v325, 0
      %v379 = vsel %vm332, %v326, 0
      %vm381 = vcmask 1045504
      %v383 = vsel %vm381, %v331, 0
      %385 = vmatpush.bf16.msra.mxu0 0
      %386 = vmatpush.bf16.msra.mxu0 0
      %387 = vmatpush.bf16.msra.mxu0 0
      %388 = vmatpush.bf16.msra.mxu0 0
      %389 = vmatpush.bf16.msra.mxu0 0
      %390 = vmatpush.bf16.msra.mxu0 0
      %391 = vmatpush.bf16.msra.mxu0 0
      %392 = vmatpush.bf16.msra.mxu0 %v383
      %393 = vmatmul.bf16.gmra.mxu0 %v334
      %v394 = vpop.f32.mrf.mxu0
      %v395 = vadd.f32 0.0, %v394
      %v396 = vpop.f32.mrf.mxu0
      %v397 = vadd.f32 0.0, %v396
      %398 = vmatmul.bf16.gmra.mxu0 %v337
      %v399 = vpop.f32.mrf.mxu0
      %v400 = vadd.f32 0.0, %v399
      %v401 = vpop.f32.mrf.mxu0
      %v402 = vadd.f32 0.0, %v401
      %403 = vmatmul.bf16.gmra.mxu0 %v340
      %v404 = vpop.f32.mrf.mxu0
      %v405 = vadd.f32 0.0, %v404
      %v406 = vpop.f32.mrf.mxu0
      %v407 = vadd.f32 0.0, %v406
      %408 = vmatmul.bf16.gmra.mxu0 %v343
      %v409 = vpop.f32.mrf.mxu0
      %v410 = vadd.f32 0.0, %v409
      %v411 = vpop.f32.mrf.mxu0
      %v412 = vadd.f32 0.0, %v411
      %413 = vmatmul.bf16.gmra.mxu0 %v346
      %v414 = vpop.f32.mrf.mxu0
      %v415 = vadd.f32 0.0, %v414
      %v416 = vpop.f32.mrf.mxu0
      %v417 = vadd.f32 0.0, %v416
      %418 = vmatmul.bf16.gmra.mxu0 %v349
      %v419 = vpop.f32.mrf.mxu0
      %v420 = vadd.f32 0.0, %v419
      %v421 = vpop.f32.mrf.mxu0
      %v422 = vadd.f32 0.0, %v421
      %423 = vmatmul.bf16.gmra.mxu0 %v352
      %v424 = vpop.f32.mrf.mxu0
      %v425 = vadd.f32 0.0, %v424
      %v426 = vpop.f32.mrf.mxu0
      %v427 = vadd.f32 0.0, %v426
      %428 = vmatmul.bf16.gmra.mxu0 %v355
      %v429 = vpop.f32.mrf.mxu0
      %v430 = vadd.f32 0.0, %v429
      %v431 = vpop.f32.mrf.mxu0
      %v432 = vadd.f32 0.0, %v431
      %433 = vmatmul.bf16.gmra.mxu0 %v358
      %v434 = vpop.f32.mrf.mxu0
      %v435 = vadd.f32 0.0, %v434
      %v436 = vpop.f32.mrf.mxu0
      %v437 = vadd.f32 0.0, %v436
      %438 = vmatmul.bf16.gmra.mxu0 %v361
      %v439 = vpop.f32.mrf.mxu0
      %v440 = vadd.f32 0.0, %v439
      %v441 = vpop.f32.mrf.mxu0
      %v442 = vadd.f32 0.0, %v441
      %443 = vmatmul.bf16.gmra.mxu0 %v364
      %v444 = vpop.f32.mrf.mxu0
      %v445 = vadd.f32 0.0, %v444
      %v446 = vpop.f32.mrf.mxu0
      %v447 = vadd.f32 0.0, %v446
      %448 = vmatmul.bf16.gmra.mxu0 %v367
      %v449 = vpop.f32.mrf.mxu0
      %v450 = vadd.f32 0.0, %v449
      %v451 = vpop.f32.mrf.mxu0
      %v452 = vadd.f32 0.0, %v451
      %453 = vmatmul.bf16.gmra.mxu0 %v370
      %v454 = vpop.f32.mrf.mxu0
      %v455 = vadd.f32 0.0, %v454
      %v456 = vpop.f32.mrf.mxu0
      %v457 = vadd.f32 0.0, %v456
      %458 = vmatmul.bf16.gmra.mxu0 %v373
      %v459 = vpop.f32.mrf.mxu0
      %v460 = vadd.f32 0.0, %v459
      %v461 = vpop.f32.mrf.mxu0
      %v462 = vadd.f32 0.0, %v461
      %463 = vmatmul.bf16.gmra.mxu0 %v376
      %v464 = vpop.f32.mrf.mxu0
      %v465 = vadd.f32 0.0, %v464
      %v466 = vpop.f32.mrf.mxu0
      %v467 = vadd.f32 0.0, %v466
      %468 = vmatmul.bf16.gmra.mxu0 %v379
      %v469 = vpop.f32.mrf.mxu0
      %v470 = vadd.f32 0.0, %v469
      %v471 = vpop.f32.mrf.mxu0
      %v472 = vadd.f32 0.0, %v471
      %473 = vdwg.mxu0
      %v476 = vunpack.c.l.b16 %v208
      %v477 = vunpack.c.l.b16 %v209
      %v478 = vpack.c.b16 %v477, %v476
      %v481 = vunpack.c.l.b16 %v240
      %v482 = vunpack.c.l.b16 %v241
      %v483 = vpack.c.b16 %v482, %v481
      %v485 = vsel %vm332, %v478, 0
      %v488 = vsel %vm381, %v483, 0
      %490 = vmatpush.bf16.msra.mxu0 0
      %491 = vmatpush.bf16.msra.mxu0 0
      %492 = vmatpush.bf16.msra.mxu0 0
      %493 = vmatpush.bf16.msra.mxu0 0
      %494 = vmatpush.bf16.msra.mxu0 0
      %495 = vmatpush.bf16.msra.mxu0 0
      %496 = vmatpush.bf16.msra.mxu0 0
      %497 = vmatpush.bf16.msra.mxu0 %v488
      %498 = vmatmul.bf16.gmra.mxu0 %v485
      %v499 = vpop.f32.mrf.mxu0
      %v500 = vadd.f32 %v395, %v499
      %v501 = vpop.f32.mrf.mxu0
      %v502 = vadd.f32 %v397, %v501
      %503 = vmatmul.bf16.gmra.mxu0 %v334
      %v504 = vpop.f32.mrf.mxu0
      %v505 = vadd.f32 %v400, %v504
      %v506 = vpop.f32.mrf.mxu0
      %v507 = vadd.f32 %v402, %v506
      %508 = vmatmul.bf16.gmra.mxu0 %v337
      %v509 = vpop.f32.mrf.mxu0
      %v510 = vadd.f32 %v405, %v509
      %v511 = vpop.f32.mrf.mxu0
      %v512 = vadd.f32 %v407, %v511
      %513 = vmatmul.bf16.gmra.mxu0 %v340
      %v514 = vpop.f32.mrf.mxu0
      %v515 = vadd.f32 %v410, %v514
      %v516 = vpop.f32.mrf.mxu0
      %v517 = vadd.f32 %v412, %v516
      %518 = vmatmul.bf16.gmra.mxu0 %v343
      %v519 = vpop.f32.mrf.mxu0
      %v520 = vadd.f32 %v415, %v519
      %v521 = vpop.f32.mrf.mxu0
      %v522 = vadd.f32 %v417, %v521
      %523 = vmatmul.bf16.gmra.mxu0 %v346
      %v524 = vpop.f32.mrf.mxu0
      %v525 = vadd.f32 %v420, %v524
      %v526 = vpop.f32.mrf.mxu0
      %v527 = vadd.f32 %v422, %v526
      %528 = vmatmul.bf16.gmra.mxu0 %v349
      %v529 = vpop.f32.mrf.mxu0
      %v530 = vadd.f32 %v425, %v529
      %v531 = vpop.f32.mrf.mxu0
      %v532 = vadd.f32 %v427, %v531
      %533 = vmatmul.bf16.gmra.mxu0 %v352
      %v534 = vpop.f32.mrf.mxu0
      %v535 = vadd.f32 %v430, %v534
      %v536 = vpop.f32.mrf.mxu0
      %v537 = vadd.f32 %v432, %v536
      %538 = vmatmul.bf16.gmra.mxu0 %v355
      %v539 = vpop.f32.mrf.mxu0
      %v540 = vadd.f32 %v435, %v539
      %v541 = vpop.f32.mrf.mxu0
      %v542 = vadd.f32 %v437, %v541
      %543 = vmatmul.bf16.gmra.mxu0 %v358
      %v544 = vpop.f32.mrf.mxu0
      %v545 = vadd.f32 %v440, %v544
      %v546 = vpop.f32.mrf.mxu0
      %v547 = vadd.f32 %v442, %v546
      %548 = vmatmul.bf16.gmra.mxu0 %v361
      %v549 = vpop.f32.mrf.mxu0
      %v550 = vadd.f32 %v445, %v549
      %v551 = vpop.f32.mrf.mxu0
      %v552 = vadd.f32 %v447, %v551
      %553 = vmatmul.bf16.gmra.mxu0 %v364
      %v554 = vpop.f32.mrf.mxu0
      %v555 = vadd.f32 %v450, %v554
      %v556 = vpop.f32.mrf.mxu0
      %v557 = vadd.f32 %v452, %v556
      %558 = vmatmul.bf16.gmra.mxu0 %v367
      %v559 = vpop.f32.mrf.mxu0
      %v560 = vadd.f32 %v455, %v559
      %v561 = vpop.f32.mrf.mxu0
      %v562 = vadd.f32 %v457, %v561
      %563 = vmatmul.bf16.gmra.mxu0 %v370
      %v564 = vpop.f32.mrf.mxu0
      %v565 = vadd.f32 %v460, %v564
      %v566 = vpop.f32.mrf.mxu0
      %v567 = vadd.f32 %v462, %v566
      %568 = vmatmul.bf16.gmra.mxu0 %v373
      %v569 = vpop.f32.mrf.mxu0
      %v570 = vadd.f32 %v465, %v569
      %v571 = vpop.f32.mrf.mxu0
      %v572 = vadd.f32 %v467, %v571
      %573 = vmatmul.bf16.gmra.mxu0 %v376
      %v574 = vpop.f32.mrf.mxu0
      %v575 = vadd.f32 %v470, %v574
      %v576 = vpop.f32.mrf.mxu0
      %v577 = vadd.f32 %v472, %v576
      %578 = vdwg.mxu0
      %v579 = vld [vmem:[%s197 + $0x10] sm:$0xf]
      %v580 = vld [vmem:[%s197 + $0x14] sm:$0xf]
      %v581 = vld [vmem:[%s197 + $0x18] sm:$0xf]
      %v582 = vld [vmem:[%s197 + $0x1c] sm:$0xf]
      %v583 = vld [vmem:[%s197 + $0x20] sm:$0xf]
      %v584 = vld [vmem:[%s197 + $0x24] sm:$0xf]
      %v585 = vld [vmem:[%s197 + $0x28] sm:$0xf]
      %v586 = vld [vmem:[%s197 + $0x2c] sm:$0xf]
      %v587 = vld [vmem:[%s197 + $0x30] sm:$0xf]
      %v588 = vld [vmem:[%s197 + $0x34] sm:$0xf]
      %v589 = vld [vmem:[%s197 + $0x38] sm:$0xf]
      %v590 = vld [vmem:[%s197 + $0x3c] sm:$0xf]
      %v591 = vld [vmem:[%s197 + $0x40] sm:$0xf]
      %v592 = vld [vmem:[%s197 + $0x44] sm:$0xf]
      %v593 = vld [vmem:[%s197 + $0x48] sm:$0xf]
      %v594 = vld [vmem:[%s197 + $0x4c] sm:$0xf]
      %v595 = vld [vmem:[%s197 + $0x50] sm:$0xf]
      %v596 = vld [vmem:[%s197 + $0x54] sm:$0xf]
      %v597 = vld [vmem:[%s197 + $0x58] sm:$0xf]
      %v598 = vld [vmem:[%s197 + $0x5c] sm:$0xf]
      %v599 = vld [vmem:[%s197 + $0x60] sm:$0xf]
      %v600 = vld [vmem:[%s197 + $0x64] sm:$0xf]
      %v601 = vld [vmem:[%s197 + $0x68] sm:$0xf]
      %v602 = vld [vmem:[%s197 + $0x6c] sm:$0xf]
      %v603 = vld [vmem:[%s197 + $0x70] sm:$0xf]
      %v604 = vld [vmem:[%s197 + $0x74] sm:$0xf]
      %v605 = vld [vmem:[%s197 + $0x78] sm:$0xf]
      %v606 = vld [vmem:[%s197 + $0x7c] sm:$0xf]
      %v607 = vld [vmem:[%s197 + $0x80] sm:$0xf]
      %v608 = vld [vmem:[%s197 + $0x84] sm:$0xf]
      %v609 = vld [vmem:[%s197 + $0x88] sm:$0xf]
      %v610 = vld [vmem:[%s197 + $0x8c] sm:$0xf]
      %s611 = scalar_lea.vmem %s1, 16
      %v612 = vld [vmem:[%s611] sm:$0xf]
      %v613 = vld [vmem:[%s611 + $0x4] sm:$0x3]
      %v646 = vunpack.c.l.b16 %v579
      %v647 = vunpack.c.l.b16 %v580
      %v648 = vunpack.c.l.b16 %v581
      %v649 = vunpack.c.l.b16 %v582
      %v650 = vunpack.c.l.b16 %v583
      %v651 = vunpack.c.l.b16 %v584
      %v652 = vunpack.c.l.b16 %v585
      %v653 = vunpack.c.l.b16 %v586
      %v654 = vunpack.c.l.b16 %v587
      %v655 = vunpack.c.l.b16 %v588
      %v656 = vunpack.c.l.b16 %v589
      %v657 = vunpack.c.l.b16 %v590
      %v658 = vunpack.c.l.b16 %v591
      %v659 = vunpack.c.l.b16 %v592
      %v660 = vunpack.c.l.b16 %v593
      %v661 = vunpack.c.l.b16 %v594
      %v662 = vunpack.c.l.b16 %v595
      %v663 = vunpack.c.l.b16 %v596
      %v664 = vunpack.c.l.b16 %v597
      %v665 = vunpack.c.l.b16 %v598
      %v666 = vunpack.c.l.b16 %v599
      %v667 = vunpack.c.l.b16 %v600
      %v668 = vunpack.c.l.b16 %v601
      %v669 = vunpack.c.l.b16 %v602
      %v670 = vunpack.c.l.b16 %v603
      %v671 = vunpack.c.l.b16 %v604
      %v672 = vunpack.c.l.b16 %v605
      %v673 = vunpack.c.l.b16 %v606
      %v674 = vunpack.c.l.b16 %v607
      %v675 = vunpack.c.l.b16 %v608
      %v676 = vunpack.c.l.b16 %v609
      %v677 = vunpack.c.l.b16 %v610
      %v678 = vpack.c.b16 %v647, %v646
      %v679 = vpack.c.b16 %v649, %v648
      %v680 = vpack.c.b16 %v651, %v650
      %v681 = vpack.c.b16 %v653, %v652
      %v682 = vpack.c.b16 %v655, %v654
      %v683 = vpack.c.b16 %v657, %v656
      %v684 = vpack.c.b16 %v659, %v658
      %v685 = vpack.c.b16 %v661, %v660
      %v686 = vpack.c.b16 %v663, %v662
      %v687 = vpack.c.b16 %v665, %v664
      %v688 = vpack.c.b16 %v667, %v666
      %v689 = vpack.c.b16 %v669, %v668
      %v690 = vpack.c.b16 %v671, %v670
      %v691 = vpack.c.b16 %v673, %v672
      %v692 = vpack.c.b16 %v675, %v674
      %v693 = vpack.c.b16 %v677, %v676
      %v696 = vunpack.c.l.b16 %v612
      %v697 = vunpack.c.l.b16 %v613
      %v698 = vpack.c.b16 %v697, %v696
      %v700 = vsel %vm332, %v678, 0
      %v703 = vsel %vm332, %v679, 0
      %v706 = vsel %vm332, %v680, 0
      %v709 = vsel %vm332, %v681, 0
      %v712 = vsel %vm332, %v682, 0
      %v715 = vsel %vm332, %v683, 0
      %v718 = vsel %vm332, %v684, 0
      %v721 = vsel %vm332, %v685, 0
      %v724 = vsel %vm332, %v686, 0
      %v727 = vsel %vm332, %v687, 0
      %v730 = vsel %vm332, %v688, 0
      %v733 = vsel %vm332, %v689, 0
      %v736 = vsel %vm332, %v690, 0
      %v739 = vsel %vm332, %v691, 0
      %v742 = vsel %vm332, %v692, 0
      %v745 = vsel %vm332, %v693, 0
      %v748 = vsel %vm381, %v698, 0
      %750 = vmatpush.bf16.msra.mxu0 0
      %751 = vmatpush.bf16.msra.mxu0 0
      %752 = vmatpush.bf16.msra.mxu0 0
      %753 = vmatpush.bf16.msra.mxu0 0
      %754 = vmatpush.bf16.msra.mxu0 0
      %755 = vmatpush.bf16.msra.mxu0 0
      %756 = vmatpush.bf16.msra.mxu0 0
      %757 = vmatpush.bf16.msra.mxu0 %v748
      %758 = vmatmul.bf16.gmra.mxu0 %v700
      %v759 = vpop.f32.mrf.mxu0
      %v760 = vadd.f32 0.0, %v759
      %v761 = vpop.f32.mrf.mxu0
      %v762 = vadd.f32 0.0, %v761
      %763 = vmatmul.bf16.gmra.mxu0 %v703
      %v764 = vpop.f32.mrf.mxu0
      %v765 = vadd.f32 0.0, %v764
      %v766 = vpop.f32.mrf.mxu0
      %v767 = vadd.f32 0.0, %v766
      %768 = vmatmul.bf16.gmra.mxu0 %v706
      %v769 = vpop.f32.mrf.mxu0
      %v770 = vadd.f32 0.0, %v769
      %v771 = vpop.f32.mrf.mxu0
      %v772 = vadd.f32 0.0, %v771
      %773 = vmatmul.bf16.gmra.mxu0 %v709
      %v774 = vpop.f32.mrf.mxu0
      %v775 = vadd.f32 0.0, %v774
      %v776 = vpop.f32.mrf.mxu0
      %v777 = vadd.f32 0.0, %v776
      %778 = vmatmul.bf16.gmra.mxu0 %v712
      %v779 = vpop.f32.mrf.mxu0
      %v780 = vadd.f32 0.0, %v779
      %v781 = vpop.f32.mrf.mxu0
      %v782 = vadd.f32 0.0, %v781
      %783 = vmatmul.bf16.gmra.mxu0 %v715
      %v784 = vpop.f32.mrf.mxu0
      %v785 = vadd.f32 0.0, %v784
      %v786 = vpop.f32.mrf.mxu0
      %v787 = vadd.f32 0.0, %v786
      %788 = vmatmul.bf16.gmra.mxu0 %v718
      %v789 = vpop.f32.mrf.mxu0
      %v790 = vadd.f32 0.0, %v789
      %v791 = vpop.f32.mrf.mxu0
      %v792 = vadd.f32 0.0, %v791
      %793 = vmatmul.bf16.gmra.mxu0 %v721
      %v794 = vpop.f32.mrf.mxu0
      %v795 = vadd.f32 0.0, %v794
      %v796 = vpop.f32.mrf.mxu0
      %v797 = vadd.f32 0.0, %v796
      %798 = vmatmul.bf16.gmra.mxu0 %v724
      %v799 = vpop.f32.mrf.mxu0
      %v800 = vadd.f32 0.0, %v799
      %v801 = vpop.f32.mrf.mxu0
      %v802 = vadd.f32 0.0, %v801
      %803 = vmatmul.bf16.gmra.mxu0 %v727
      %v804 = vpop.f32.mrf.mxu0
      %v805 = vadd.f32 0.0, %v804
      %v806 = vpop.f32.mrf.mxu0
      %v807 = vadd.f32 0.0, %v806
      %808 = vmatmul.bf16.gmra.mxu0 %v730
      %v809 = vpop.f32.mrf.mxu0
      %v810 = vadd.f32 0.0, %v809
      %v811 = vpop.f32.mrf.mxu0
      %v812 = vadd.f32 0.0, %v811
      %813 = vmatmul.bf16.gmra.mxu0 %v733
      %v814 = vpop.f32.mrf.mxu0
      %v815 = vadd.f32 0.0, %v814
      %v816 = vpop.f32.mrf.mxu0
      %v817 = vadd.f32 0.0, %v816
      %818 = vmatmul.bf16.gmra.mxu0 %v736
      %v819 = vpop.f32.mrf.mxu0
      %v820 = vadd.f32 0.0, %v819
      %v821 = vpop.f32.mrf.mxu0
      %v822 = vadd.f32 0.0, %v821
      %823 = vmatmul.bf16.gmra.mxu0 %v739
      %v824 = vpop.f32.mrf.mxu0
      %v825 = vadd.f32 0.0, %v824
      %v826 = vpop.f32.mrf.mxu0
      %v827 = vadd.f32 0.0, %v826
      %828 = vmatmul.bf16.gmra.mxu0 %v742
      %v829 = vpop.f32.mrf.mxu0
      %v830 = vadd.f32 0.0, %v829
      %v831 = vpop.f32.mrf.mxu0
      %v832 = vadd.f32 0.0, %v831
      %833 = vmatmul.bf16.gmra.mxu0 %v745
      %v834 = vpop.f32.mrf.mxu0
      %v835 = vadd.f32 0.0, %v834
      %v836 = vpop.f32.mrf.mxu0
      %v837 = vadd.f32 0.0, %v836
      %838 = vdwg.mxu0
      %v839 = vadd.f32 %v500, %v760
      %v840 = vadd.f32 %v502, %v762
      %v841 = vadd.f32 %v505, %v765
      %v842 = vadd.f32 %v507, %v767
      %v843 = vadd.f32 %v510, %v770
      %v844 = vadd.f32 %v512, %v772
      %v845 = vadd.f32 %v515, %v775
      %v846 = vadd.f32 %v517, %v777
      %v847 = vadd.f32 %v520, %v780
      %v848 = vadd.f32 %v522, %v782
      %v849 = vadd.f32 %v525, %v785
      %v850 = vadd.f32 %v527, %v787
      %v851 = vadd.f32 %v530, %v790
      %v852 = vadd.f32 %v532, %v792
      %v853 = vadd.f32 %v535, %v795
      %v854 = vadd.f32 %v537, %v797
      %v855 = vadd.f32 %v540, %v800
      %v856 = vadd.f32 %v542, %v802
      %v857 = vadd.f32 %v545, %v805
      %v858 = vadd.f32 %v547, %v807
      %v859 = vadd.f32 %v550, %v810
      %v860 = vadd.f32 %v552, %v812
      %v861 = vadd.f32 %v555, %v815
      %v862 = vadd.f32 %v557, %v817
      %v863 = vadd.f32 %v560, %v820
      %v864 = vadd.f32 %v562, %v822
      %v865 = vadd.f32 %v565, %v825
      %v866 = vadd.f32 %v567, %v827
      %v867 = vadd.f32 %v570, %v830
      %v868 = vadd.f32 %v572, %v832
      %v869 = vadd.f32 %v575, %v835
      %v870 = vadd.f32 %v577, %v837
      %v871 = vld [vmem:[%s2] sm:$0x1]
      %v873 = vperm.slane %v871, 0
      %v875 = vadd.f32 %v839, %v873
      %v876 = vadd.f32 %v840, %v873
      %v877 = vadd.f32 %v841, %v873
      %v878 = vadd.f32 %v842, %v873
      %v879 = vadd.f32 %v843, %v873
      %v880 = vadd.f32 %v844, %v873
      %v881 = vadd.f32 %v845, %v873
      %v882 = vadd.f32 %v846, %v873
      %v883 = vadd.f32 %v847, %v873
      %v884 = vadd.f32 %v848, %v873
      %v885 = vadd.f32 %v849, %v873
      %v886 = vadd.f32 %v850, %v873
      %v887 = vadd.f32 %v851, %v873
      %v888 = vadd.f32 %v852, %v873
      %v889 = vadd.f32 %v853, %v873
      %v890 = vadd.f32 %v854, %v873
      %v891 = vadd.f32 %v855, %v873
      %v892 = vadd.f32 %v856, %v873
      %v893 = vadd.f32 %v857, %v873
      %v894 = vadd.f32 %v858, %v873
      %v895 = vadd.f32 %v859, %v873
      %v896 = vadd.f32 %v860, %v873
      %v897 = vadd.f32 %v861, %v873
      %v898 = vadd.f32 %v862, %v873
      %v899 = vadd.f32 %v863, %v873
      %v900 = vadd.f32 %v864, %v873
      %v901 = vadd.f32 %v865, %v873
      %v902 = vadd.f32 %v866, %v873
      %v903 = vadd.f32 %v867, %v873
      %v904 = vadd.f32 %v868, %v873
      %v905 = vadd.f32 %v869, %v873
      %v906 = vadd.f32 %v870, %v873
      %v907 = vmax.f32 %v875, 0.0
      %v908 = vmax.f32 %v876, 0.0
      %v909 = vmax.f32 %v877, 0.0
      %v910 = vmax.f32 %v878, 0.0
      %v911 = vmax.f32 %v879, 0.0
      %v912 = vmax.f32 %v880, 0.0
      %v913 = vmax.f32 %v881, 0.0
      %v914 = vmax.f32 %v882, 0.0
      %v915 = vmax.f32 %v883, 0.0
      %v916 = vmax.f32 %v884, 0.0
      %v917 = vmax.f32 %v885, 0.0
      %v918 = vmax.f32 %v886, 0.0
      %v919 = vmax.f32 %v887, 0.0
      %v920 = vmax.f32 %v888, 0.0
      %v921 = vmax.f32 %v889, 0.0
      %v922 = vmax.f32 %v890, 0.0
      %v923 = vmax.f32 %v891, 0.0
      %v924 = vmax.f32 %v892, 0.0
      %v925 = vmax.f32 %v893, 0.0
      %v926 = vmax.f32 %v894, 0.0
      %v927 = vmax.f32 %v895, 0.0
      %v928 = vmax.f32 %v896, 0.0
      %v929 = vmax.f32 %v897, 0.0
      %v930 = vmax.f32 %v898, 0.0
      %v931 = vmax.f32 %v899, 0.0
      %v932 = vmax.f32 %v900, 0.0
      %v933 = vmax.f32 %v901, 0.0
      %v934 = vmax.f32 %v902, 0.0
      %v935 = vmax.f32 %v903, 0.0
      %v936 = vmax.f32 %v904, 0.0
      %v937 = vmax.f32 %v905, 0.0
      %v938 = vmax.f32 %v906, 0.0
      %v939 = vpack.c.bf16 %v907, %v907
      %v940 = vpack.c.bf16 %v908, %v908
      %v941 = vpack.c.bf16 %v909, %v909
      %v942 = vpack.c.bf16 %v910, %v910
      %v943 = vpack.c.bf16 %v911, %v911
      %v944 = vpack.c.bf16 %v912, %v912
      %v945 = vpack.c.bf16 %v913, %v913
      %v946 = vpack.c.bf16 %v914, %v914
      %v947 = vpack.c.bf16 %v915, %v915
      %v948 = vpack.c.bf16 %v916, %v916
      %v949 = vpack.c.bf16 %v917, %v917
      %v950 = vpack.c.bf16 %v918, %v918
      %v951 = vpack.c.bf16 %v919, %v919
      %v952 = vpack.c.bf16 %v920, %v920
      %v953 = vpack.c.bf16 %v921, %v921
      %v954 = vpack.c.bf16 %v922, %v922
      %v955 = vpack.c.bf16 %v923, %v923
      %v956 = vpack.c.bf16 %v924, %v924
      %v957 = vpack.c.bf16 %v925, %v925
      %v958 = vpack.c.bf16 %v926, %v926
      %v959 = vpack.c.bf16 %v927, %v927
      %v960 = vpack.c.bf16 %v928, %v928
      %v961 = vpack.c.bf16 %v929, %v929
      %v962 = vpack.c.bf16 %v930, %v930
      %v963 = vpack.c.bf16 %v931, %v931
      %v964 = vpack.c.bf16 %v932, %v932
      %v965 = vpack.c.bf16 %v933, %v933
      %v966 = vpack.c.bf16 %v934, %v934
      %v967 = vpack.c.bf16 %v935, %v935
      %v968 = vpack.c.bf16 %v936, %v936
      %v969 = vpack.c.bf16 %v937, %v937
      %v970 = vpack.c.bf16 %v938, %v938
      %vm971 = vcmask 257024
      %972 = vst.msk [vmem:[%s206] sm:$0xf] %vm971, %v939
      %973 = vst.msk [vmem:[%s206 + $0x4] sm:$0xf] %vm971, %v940
      %974 = vst.msk [vmem:[%s206 + $0x8] sm:$0xf] %vm971, %v941
      %975 = vst.msk [vmem:[%s206 + $0xc] sm:$0xf] %vm971, %v942
      %976 = vst.msk [vmem:[%s206 + $0x10] sm:$0xf] %vm971, %v943
      %977 = vst.msk [vmem:[%s206 + $0x14] sm:$0xf] %vm971, %v944
      %978 = vst.msk [vmem:[%s206 + $0x18] sm:$0xf] %vm971, %v945
      %979 = vst.msk [vmem:[%s206 + $0x1c] sm:$0xf] %vm971, %v946
      %980 = vst.msk [vmem:[%s206 + $0x20] sm:$0xf] %vm971, %v947
      %981 = vst.msk [vmem:[%s206 + $0x24] sm:$0xf] %vm971, %v948
      %982 = vst.msk [vmem:[%s206 + $0x28] sm:$0xf] %vm971, %v949
      %983 = vst.msk [vmem:[%s206 + $0x2c] sm:$0xf] %vm971, %v950
      %984 = vst.msk [vmem:[%s206 + $0x30] sm:$0xf] %vm971, %v951
      %985 = vst.msk [vmem:[%s206 + $0x34] sm:$0xf] %vm971, %v952
      %986 = vst.msk [vmem:[%s206 + $0x38] sm:$0xf] %vm971, %v953
      %987 = vst.msk [vmem:[%s206 + $0x3c] sm:$0xf] %vm971, %v954
      %988 = vst.msk [vmem:[%s206 + $0x40] sm:$0xf] %vm971, %v955
      %989 = vst.msk [vmem:[%s206 + $0x44] sm:$0xf] %vm971, %v956
      %990 = vst.msk [vmem:[%s206 + $0x48] sm:$0xf] %vm971, %v957
      %991 = vst.msk [vmem:[%s206 + $0x4c] sm:$0xf] %vm971, %v958
      %992 = vst.msk [vmem:[%s206 + $0x50] sm:$0xf] %vm971, %v959
      %993 = vst.msk [vmem:[%s206 + $0x54] sm:$0xf] %vm971, %v960
      %994 = vst.msk [vmem:[%s206 + $0x58] sm:$0xf] %vm971, %v961
      %995 = vst.msk [vmem:[%s206 + $0x5c] sm:$0xf] %vm971, %v962
      %996 = vst.msk [vmem:[%s206 + $0x60] sm:$0xf] %vm971, %v963
      %997 = vst.msk [vmem:[%s206 + $0x64] sm:$0xf] %vm971, %v964
      %998 = vst.msk [vmem:[%s206 + $0x68] sm:$0xf] %vm971, %v965
      %999 = vst.msk [vmem:[%s206 + $0x6c] sm:$0xf] %vm971, %v966
      %1000 = vst.msk [vmem:[%s206 + $0x70] sm:$0xf] %vm971, %v967
      %1001 = vst.msk [vmem:[%s206 + $0x74] sm:$0xf] %vm971, %v968
      %1002 = vst.msk [vmem:[%s206 + $0x78] sm:$0xf] %vm971, %v969
      %1003 = vst.msk [vmem:[%s206 + $0x7c] sm:$0xf] %vm971, %v970
      %p1004 = scmp.lt.s32.totalorder %s18, 1
      %s1005 = scalar_select %p1004, %s18, 1
      %p1006 = scmp.lt.s32.totalorder %s19, 0
      %s1007 = scalar_select %p1006, %s19, 0
      %s1008 = smul.addr %s1007, 32
      %s1009 = smul.addr %s1005, 32
      %s1010 = sadd.s32 %s1008, %s1009
      %s1011 = smul.addr %s1010, 4
      %s1012 = scalar_lea.vmem %s3, %s1011
      // Predicated region
      $region33: #{tpu_custom_call.1} parent=31 // pred_check
        %p1013 = pneg %p116
      $region34: #{tpu_custom_call.1} parent=31 // pred_check_branch
        %1015 = sbr.rel (%p1013) target = $region36
      $region35: #{tpu_custom_call.1} parent=31 // pred_region
        _
      $region36: #{tpu_custom_call.1} parent=31 // pred_fallthru
        _
    $region32: #{tpu_custom_call.1} parent=5 // pred_fallthru
      _
    %p1016 = scmp.le.s32.totalorder 2, %s9
    // Predicated region
    $region37: #{tpu_custom_call.1} parent=5 // pred_check
      %p1017 = pneg %p1016
    $region38: #{tpu_custom_call.1} parent=5 // pred_check_branch
      %1019 = sbr.rel (%p1017) target = $region40
    $region39: #{tpu_custom_call.1} parent=5 // pred_region
      %s1020 = ssub.s32 %s9, 2
      // Predicated region
      $region41: #{tpu_custom_call.1} parent=39 // pred_check
        %p1021 = pneg %p122
      $region42: #{tpu_custom_call.1} parent=39 // pred_check_branch
        %1023 = sbr.rel (%p1021) target = $region44
      $region43: #{tpu_custom_call.1} parent=39 // pred_region
        %p1024 = scmp.lt.s32.totalorder %s20, 1
        %s1025 = scalar_select %p1024, %s20, 1
        %p1026 = scmp.lt.s32.totalorder %s21, 0
        %s1027 = scalar_select %p1026, %s21, 0
        %s1028 = smul.addr %s1027, 32
        %s1029 = smul.addr %s1025, 32
        %s1030 = sadd.s32 %s1028, %s1029
        %s1031 = smul.addr %s1030, 4
        %s1032 = scalar_lea.vmem %s3, %s1031
      $region44: #{tpu_custom_call.1} parent=39 // pred_fallthru
        _
    $region40: #{tpu_custom_call.1} parent=5 // pred_fallthru
      _
  $region6: #{tpu_custom_call.1} parent=0 // loop_footer
    %s13 = sadd.s32 1, %s9
  $region7: #{tpu_custom_call.1} parent=0 // loop_footer_branch
    %8 = sbr.rel target = $region3
  $region8: #{tpu_custom_call.1} parent=0 // loop_exit
    _

</llo_original>
